<compile_context>
chip_gen: v7x
topology: tpu7x:2x2x1
jax: 0.10.0
libtpu: 0.0.40
codegen_flags: <defaults>
</compile_context>

<pallas_src>
import functools
import math

import jax
import jax.numpy as jnp
from jax import lax
from jax.experimental import pallas as pl
from jax.experimental.pallas import tpu as pltpu


def _flash_attention_kernel(q_ref, k_ref, v_ref, o_ref, m_sc, l_sc, acc_sc,
                            *, use_mask: bool, tq: int, tk: int):
    qi = pl.program_id(1)
    ki = pl.program_id(2)

    @pl.when(ki == 0)
    def _init():
        m_sc[...] = jnp.full_like(m_sc, -jnp.inf)
        l_sc[...] = jnp.zeros_like(l_sc)
        acc_sc[...] = jnp.zeros_like(acc_sc)

    def _compute():
        d = q_ref.shape[-1]
        scale = 1.0 / math.sqrt(float(d))
        # Fold 1/sqrt(d) into q: O(TQ*D) multiply instead of O(TQ*TK).
        q = q_ref[...] * scale                               # (BB, TQ, D)
        k = k_ref[...]                                       # (BB, TK, D)

        # bqd,bkd->bqk on the MXU, no explicit transpose of k.
        s = lax.dot_general(
            q, k,
            dimension_numbers=(((2,), (2,)), ((0,), (0,))),
            preferred_element_type=jnp.float32)              # (BB, TQ, TK)

        if use_mask:
            # Faithful to torch: mask where tril(scores) == 0, i.e. strictly
            # above the diagonal OR an exact 0.0 on/below it.  Single select.
            row = qi * tq + lax.broadcasted_iota(jnp.int32, s.shape, 1)
            col = ki * tk + lax.broadcasted_iota(jnp.int32, s.shape, 2)
            s = jnp.where((col > row) | (s == 0.0), -jnp.inf, s)

        m_prev = m_sc[...]
        m_new = jnp.maximum(m_prev, jnp.max(s, axis=-1, keepdims=True))
        alpha = jnp.exp(m_prev - m_new)
        p = jnp.exp(s - m_new)
        l_sc[...] = alpha * l_sc[...] + jnp.sum(p, axis=-1, keepdims=True)

        # bqk,bkd->bqd on the MXU, f32 accumulation.
        pv = lax.dot_general(
            p.astype(v_ref.dtype), v_ref[...],
            dimension_numbers=(((2,), (1,)), ((0,), (0,))),
            preferred_element_type=jnp.float32)              # (BB, TQ, D)
        acc_sc[...] = alpha * acc_sc[...] + pv
        m_sc[...] = m_new

    if use_mask:
        # Skip KV tiles that lie entirely above the diagonal for this Q tile.
        @pl.when(ki * tk <= (qi + 1) * tq - 1)
        def _():
            _compute()
    else:
        _compute()

    @pl.when(ki == pl.num_programs(2) - 1)
    def _finalize():
        # Normalize the small (BB, TQ, D) tile; approx reciprocal -> EUP slot.
        inv = pl.reciprocal(l_sc[...], approx=True)
        o_ref[...] = (acc_sc[...] * inv).astype(o_ref.dtype)


def _pick_seq_tile(s: int, cap: int) -> int:
    """Largest tile <= cap that divides s and satisfies the (8,128) rule."""
    if s <= cap:
        return s
    for t in range(cap, 7, -1):
        if t % 8 == 0 and s % t == 0:
            return t
    return s  # fall back to the full axis as a single block


def _pick_batch_block(b: int, tq: int, tk: int, d: int,
                      budget_bytes: int = 4 * 1024 * 1024) -> int:
    """Batch rows per grid step, keeping the f32 working set small (v7x-safe)."""
    per_batch = (tq * d + 2 * tk * d + tq * tk + tq * d + 2 * tq) * 4
    bb = max(1, min(b, budget_bytes // max(per_batch, 1)))
    while b % bb != 0:
        bb -= 1
    return bb


@functools.partial(jax.jit, static_argnames=("mask",))
def attention(q, k, v, mask: bool = False):
    B, S, D = q.shape
    # Tiles sized so double-buffered Q/K/V blocks + scratch stay in the
    # low-MiB range (well under v7x's 64 MiB VMEM / 32 MiB default scope).
    tq = _pick_seq_tile(S, 512)
    tk = _pick_seq_tile(S, 512)
    bb = _pick_batch_block(B, tq, tk, D)

    kernel = functools.partial(_flash_attention_kernel,
                               use_mask=mask, tq=tq, tk=tk)
    grid = (B // bb, S // tq, S // tk)

    return pl.pallas_call(
        kernel,
        out_shape=jax.ShapeDtypeStruct((B, S, D), q.dtype),
        grid_spec=pltpu.PrefetchScalarGridSpec(
            num_scalar_prefetch=0,
            grid=grid,
            in_specs=[
                pl.BlockSpec((bb, tq, D), lambda b, qi, ki: (b, qi, 0)),
                pl.BlockSpec((bb, tk, D), lambda b, qi, ki: (b, ki, 0)),
                pl.BlockSpec((bb, tk, D), lambda b, qi, ki: (b, ki, 0)),
            ],
            out_specs=pl.BlockSpec((bb, tq, D), lambda b, qi, ki: (b, qi, 0)),
            scratch_shapes=[
                pltpu.VMEM((bb, tq, 1), jnp.float32),   # running max
                pltpu.VMEM((bb, tq, 1), jnp.float32),   # running sum
                pltpu.VMEM((bb, tq, D), jnp.float32),   # output accumulator
            ],
        ),
        compiler_params=pltpu.CompilerParams(
            dimension_semantics=("parallel", "parallel", "arbitrary"),
        ),
    )(q, k, v)


def _reference(q, k, v, mask=False):
    d = k.shape[-1]
    scores = jnp.einsum("bqd,bkd->bqk", q, k) / (d ** 0.5)
    if mask:
        tril = jnp.tril(scores)
        scores = jnp.where(tril == 0.0, -jnp.inf, scores)
    p = jax.nn.softmax(scores, axis=-1)
    return jnp.einsum("bqk,bkd->bqd", p, v)


if __name__ == "__main__":
    key = jax.random.PRNGKey(0)
    kq, kk, kv = jax.random.split(key, 3)

    B, S, D = 2, 8, 32
    q = jax.random.normal(kq, (B, S, D), dtype=jnp.float32)
    k = jax.random.normal(kk, (B, S, D), dtype=jnp.float32)
    v = jax.random.normal(kv, (B, S, D), dtype=jnp.float32)

    out = jax.block_until_ready(attention(q, k, v, mask=False))
    out_masked = jax.block_until_ready(attention(q, k, v, mask=True))

    ref = _reference(q, k, v, mask=False)
    ref_masked = _reference(q, k, v, mask=True)

    # Tolerance accounts for the approximate (EUP) reciprocal in the epilogue.
    assert jnp.allclose(out, ref, atol=5e-3, rtol=5e-3)
    assert jnp.allclose(out_masked, ref_masked, atol=5e-3, rtol=5e-3)

    print("KERNEL_OK")
</pallas_src>

<mosaic_0001>
module attributes {stable_mosaic.version = 11 : i64} {
  func.func @_flash_attention_kernel(%arg0: i32, %arg1: i32, %arg2: i32, %arg3: memref<2x8x32xf32, #tpu.memory_space<vmem>>, %arg4: memref<2x8x32xf32, #tpu.memory_space<vmem>>, %arg5: memref<2x8x32xf32, #tpu.memory_space<vmem>>, %arg6: memref<2x8x32xf32, #tpu.memory_space<vmem>>, %arg7: memref<2x8x1xf32, #tpu.memory_space<vmem>>, %arg8: memref<2x8x1xf32, #tpu.memory_space<vmem>>, %arg9: memref<2x8x32xf32, #tpu.memory_space<vmem>>) attributes {dimension_semantics = [#tpu.dimension_semantics<parallel>, #tpu.dimension_semantics<parallel>, #tpu.dimension_semantics<arbitrary>], iteration_bounds = array<i64: 1, 1, 1>, scalar_prefetch = 0 : i64, scratch_operands = 3 : i64, tpu.core_type = #tpu.core_type<tc>, window_params = [{transform_indices = @transform_0, window_bounds = array<i64: 2, 8, 32>}, {transform_indices = @transform_1, window_bounds = array<i64: 2, 8, 32>}, {transform_indices = @transform_2, window_bounds = array<i64: 2, 8, 32>}, {transform_indices = @transform_3, window_bounds = array<i64: 2, 8, 32>}]} {
    %c0_i32 = arith.constant 0 : i32
    %0 = arith.cmpi eq, %arg2, %c0_i32 : i32
    %1 = arith.extui %0 : i1 to i32
    %c0_i32_0 = arith.constant 0 : i32
    %2 = arith.cmpi ne, %1, %c0_i32_0 : i32
    scf.if %2 {
      %cst_33 = arith.constant 0xFF800000 : f32
      %34 = vector.broadcast %cst_33 : f32 to vector<2x8x1xf32>
      %c0_34 = arith.constant 0 : index
      %c0_35 = arith.constant 0 : index
      %c0_36 = arith.constant 0 : index
      %35 = vector.load %arg7[%c0_34, %c0_35, %c0_36] : memref<2x8x1xf32, #tpu.memory_space<vmem>>, vector<2x8x1xf32>
      tpu.vector_store %arg7[%c0_34, %c0_35, %c0_36], %34 {strides = array<i32>} : memref<2x8x1xf32, #tpu.memory_space<vmem>>, vector<2x8x1xf32>,
      %cst_37 = arith.constant 0.000000e+00 : f32
      %36 = vector.broadcast %cst_37 : f32 to vector<2x8x1xf32>
      %c0_38 = arith.constant 0 : index
      %c0_39 = arith.constant 0 : index
      %c0_40 = arith.constant 0 : index
      %37 = vector.load %arg8[%c0_38, %c0_39, %c0_40] : memref<2x8x1xf32, #tpu.memory_space<vmem>>, vector<2x8x1xf32>
      tpu.vector_store %arg8[%c0_38, %c0_39, %c0_40], %36 {strides = array<i32>} : memref<2x8x1xf32, #tpu.memory_space<vmem>>, vector<2x8x1xf32>,
      %cst_41 = arith.constant 0.000000e+00 : f32
      %38 = vector.broadcast %cst_41 : f32 to vector<2x8x32xf32>
      %c0_42 = arith.constant 0 : index
      %c0_43 = arith.constant 0 : index
      %c0_44 = arith.constant 0 : index
      %39 = vector.load %arg9[%c0_42, %c0_43, %c0_44] : memref<2x8x32xf32, #tpu.memory_space<vmem>>, vector<2x8x32xf32>
      tpu.vector_store %arg9[%c0_42, %c0_43, %c0_44], %38 {strides = array<i32>} : memref<2x8x32xf32, #tpu.memory_space<vmem>>, vector<2x8x32xf32>,
    } else {
    }
    %c0 = arith.constant 0 : index
    %c0_1 = arith.constant 0 : index
    %c0_2 = arith.constant 0 : index
    %3 = vector.load %arg3[%c0, %c0_1, %c0_2] : memref<2x8x32xf32, #tpu.memory_space<vmem>>, vector<2x8x32xf32>
    %cst = arith.constant 0.176776692 : f32
    %4 = vector.broadcast %cst : f32 to vector<2x8x32xf32>
    %5 = arith.mulf %3, %4 : vector<2x8x32xf32>
    %c0_3 = arith.constant 0 : index
    %c0_4 = arith.constant 0 : index
    %c0_5 = arith.constant 0 : index
    %6 = vector.load %arg4[%c0_3, %c0_4, %c0_5] : memref<2x8x32xf32, #tpu.memory_space<vmem>>, vector<2x8x32xf32>
    %cst_6 = arith.constant dense<0.000000e+00> : vector<2x8x8xf32>
    %7 = tpu.matmul %5, %6, %cst_6 {dimension_numbers = #tpu.dot_dimension_numbers<[2], [2], [1], [1], [0, 0, 0, 1, 1, 1], [0], [0]>} : vector<2x8x32xf32>, vector<2x8x32xf32>, vector<2x8x8xf32> -> vector<2x8x8xf32>
    %c0_7 = arith.constant 0 : index
    %c0_8 = arith.constant 0 : index
    %c0_9 = arith.constant 0 : index
    %8 = vector.load %arg7[%c0_7, %c0_8, %c0_9] : memref<2x8x1xf32, #tpu.memory_space<vmem>>, vector<2x8x1xf32>
    %cst_10 = arith.constant dense<0xFF800000> : vector<2x8xf32>
    %9 = vector.multi_reduction <maximumf>, %7, %cst_10 [2] : vector<2x8x8xf32> to vector<2x8xf32>
    %10 = vector.shape_cast %9 : vector<2x8xf32> to vector<2x8x1xf32>
    %11 = arith.maximumf %8, %10 : vector<2x8x1xf32>
    %12 = arith.subf %8, %11 : vector<2x8x1xf32>
    %13 = math.exp %12 : vector<2x8x1xf32>
    %14 = vector.broadcast %11 : vector<2x8x1xf32> to vector<2x8x8xf32>
    %15 = arith.subf %7, %14 : vector<2x8x8xf32>
    %16 = math.exp %15 : vector<2x8x8xf32>
    %c0_11 = arith.constant 0 : index
    %c0_12 = arith.constant 0 : index
    %c0_13 = arith.constant 0 : index
    %17 = vector.load %arg8[%c0_11, %c0_12, %c0_13] : memref<2x8x1xf32, #tpu.memory_space<vmem>>, vector<2x8x1xf32>
    %18 = arith.mulf %13, %17 : vector<2x8x1xf32>
    %cst_14 = arith.constant dense<0.000000e+00> : vector<2x8xf32>
    %19 = vector.multi_reduction <add>, %16, %cst_14 [2] : vector<2x8x8xf32> to vector<2x8xf32>
    %20 = vector.shape_cast %19 : vector<2x8xf32> to vector<2x8x1xf32>
    %21 = arith.addf %18, %20 : vector<2x8x1xf32>
    %c0_15 = arith.constant 0 : index
    %c0_16 = arith.constant 0 : index
    %c0_17 = arith.constant 0 : index
    %22 = vector.load %arg8[%c0_15, %c0_16, %c0_17] : memref<2x8x1xf32, #tpu.memory_space<vmem>>, vector<2x8x1xf32>
    tpu.vector_store %arg8[%c0_15, %c0_16, %c0_17], %21 {strides = array<i32>} : memref<2x8x1xf32, #tpu.memory_space<vmem>>, vector<2x8x1xf32>,
    %c0_18 = arith.constant 0 : index
    %c0_19 = arith.constant 0 : index
    %c0_20 = arith.constant 0 : index
    %23 = vector.load %arg5[%c0_18, %c0_19, %c0_20] : memref<2x8x32xf32, #tpu.memory_space<vmem>>, vector<2x8x32xf32>
    %cst_21 = arith.constant dense<0.000000e+00> : vector<2x8x32xf32>
    %24 = tpu.matmul %16, %23, %cst_21 {dimension_numbers = #tpu.dot_dimension_numbers<[2], [1], [1], [2], [0, 0, 0, 1, 1, 2], [0], [0]>} : vector<2x8x8xf32>, vector<2x8x32xf32>, vector<2x8x32xf32> -> vector<2x8x32xf32>
    %c0_22 = arith.constant 0 : index
    %c0_23 = arith.constant 0 : index
    %c0_24 = arith.constant 0 : index
    %25 = vector.load %arg9[%c0_22, %c0_23, %c0_24] : memref<2x8x32xf32, #tpu.memory_space<vmem>>, vector<2x8x32xf32>
    %26 = vector.broadcast %13 : vector<2x8x1xf32> to vector<2x8x32xf32>
    %27 = arith.mulf %26, %25 : vector<2x8x32xf32>
    %28 = arith.addf %27, %24 : vector<2x8x32xf32>
    %c0_25 = arith.constant 0 : index
    %c0_26 = arith.constant 0 : index
    %c0_27 = arith.constant 0 : index
    %29 = vector.load %arg9[%c0_25, %c0_26, %c0_27] : memref<2x8x32xf32, #tpu.memory_space<vmem>>, vector<2x8x32xf32>
    tpu.vector_store %arg9[%c0_25, %c0_26, %c0_27], %28 {strides = array<i32>} : memref<2x8x32xf32, #tpu.memory_space<vmem>>, vector<2x8x32xf32>,
    %c0_28 = arith.constant 0 : index
    %c0_29 = arith.constant 0 : index
    %c0_30 = arith.constant 0 : index
    %30 = vector.load %arg7[%c0_28, %c0_29, %c0_30] : memref<2x8x1xf32, #tpu.memory_space<vmem>>, vector<2x8x1xf32>
    tpu.vector_store %arg7[%c0_28, %c0_29, %c0_30], %11 {strides = array<i32>} : memref<2x8x1xf32, #tpu.memory_space<vmem>>, vector<2x8x1xf32>,
    %c0_i32_31 = arith.constant 0 : i32
    %31 = arith.cmpi eq, %arg2, %c0_i32_31 : i32
    %32 = arith.extui %31 : i1 to i32
    %c0_i32_32 = arith.constant 0 : i32
    %33 = arith.cmpi ne, %32, %c0_i32_32 : i32
    scf.if %33 {
      %c0_33 = arith.constant 0 : index
      %c0_34 = arith.constant 0 : index
      %c0_35 = arith.constant 0 : index
      %34 = vector.load %arg8[%c0_33, %c0_34, %c0_35] : memref<2x8x1xf32, #tpu.memory_space<vmem>>, vector<2x8x1xf32>
      %35 = tpu.reciprocal %34 {approx = true} : vector<2x8x1xf32> -> vector<2x8x1xf32>
      %c0_36 = arith.constant 0 : index
      %c0_37 = arith.constant 0 : index
      %c0_38 = arith.constant 0 : index
      %36 = vector.load %arg9[%c0_36, %c0_37, %c0_38] : memref<2x8x32xf32, #tpu.memory_space<vmem>>, vector<2x8x32xf32>
      %37 = vector.broadcast %35 : vector<2x8x1xf32> to vector<2x8x32xf32>
      %38 = arith.mulf %36, %37 : vector<2x8x32xf32>
      %c0_39 = arith.constant 0 : index
      %c0_40 = arith.constant 0 : index
      %c0_41 = arith.constant 0 : index
      %39 = vector.load %arg6[%c0_39, %c0_40, %c0_41] : memref<2x8x32xf32, #tpu.memory_space<vmem>>, vector<2x8x32xf32>
      tpu.vector_store %arg6[%c0_39, %c0_40, %c0_41], %38 {strides = array<i32>} : memref<2x8x32xf32, #tpu.memory_space<vmem>>, vector<2x8x32xf32>,
    } else {
    }
    return
  }
  func.func @transform_0(%arg0: i32, %arg1: i32, %arg2: i32) -> (i32, i32, i32) {
    %c0_i32 = arith.constant 0 : i32
    %c0_i32_0 = arith.constant 0 : i32
    return %arg0, %arg1, %c0_i32 : i32, i32, i32
  }
  func.func @transform_1(%arg0: i32, %arg1: i32, %arg2: i32) -> (i32, i32, i32) {
    %c0_i32 = arith.constant 0 : i32
    %c0_i32_0 = arith.constant 0 : i32
    return %arg0, %arg2, %c0_i32 : i32, i32, i32
  }
  func.func @transform_2(%arg0: i32, %arg1: i32, %arg2: i32) -> (i32, i32, i32) {
    %c0_i32 = arith.constant 0 : i32
    %c0_i32_0 = arith.constant 0 : i32
    return %arg0, %arg2, %c0_i32 : i32, i32, i32
  }
  func.func @transform_3(%arg0: i32, %arg1: i32, %arg2: i32) -> (i32, i32, i32) {
    %c0_i32 = arith.constant 0 : i32
    %c0_i32_0 = arith.constant 0 : i32
    return %arg0, %arg1, %c0_i32 : i32, i32, i32
  }
}

</mosaic_0001>

<llo_original>
// kernel: attention.1
$region0: #{attention.1}
  #allocation0 [shape = 'u32[]', space=smem, size = 0x4, offset = 0x4, fixed_abs, tag = 'smem constant byte address 0x4 - core index']
  #allocation1 [shape = 'u32[144,128]{1,0:T(1,128)}', space=vmem, size = 0x12000, scoped, tag = 'internal scratch']
  #allocation2 [shape = 'f32[2,8,1]{2,1,0:T(8,128)}', space=vmem, size = 0x2000, scoped, tag = 'scratch operand']
  #allocation3 [shape = 'f32[2,8,1]{2,1,0:T(8,128)}', space=vmem, size = 0x2000, scoped, tag = 'scratch operand']
  #allocation4 [shape = 'f32[2,8,32]{2,1,0:T(8,128)}', space=vmem, size = 0x2000, scoped, tag = 'scratch operand']
  %s0 = inlined_call_operand.hbm [shape: f32[2,8,32], index: 0, kind: input, shape index: {}]
  %s1 = inlined_call_operand.hbm [shape: f32[2,8,32], index: 1, kind: input, shape index: {}]
  %s2 = inlined_call_operand.hbm [shape: f32[2,8,32], index: 2, kind: input, shape index: {}]
  %s3 = inlined_call_operand.hbm [shape: f32[2,8,32], index: 3, kind: output, shape index: {}]
  %s4 = sld [smem:[#allocation0]]
  $region42: #{attention.1} parent=0
    _
  %s6 = ssub.s32 1, %s4
  %s7 = scalar_select 0, %s6, %s4
  $region1: #{attention.1} parent=0
    #allocation5 [shape = 'u8[8192]{0}', space=vmem, size = 0x2000, scoped, tag = 'input window, operand 0, single buffered']
    #allocation6 [shape = 's32[1]{0}', space=sflag, size = 0x4, scoped, tag = 'scoped memory for attention.1']
    #allocation7 [shape = 's32[1]{0}', space=sflag, size = 0x4, scoped, tag = 'scoped memory for attention.1']
    #allocation8 [shape = 'u8[8192]{0}', space=vmem, size = 0x2000, scoped, tag = 'input window, operand 1, single buffered']
    #allocation9 [shape = 's32[1]{0}', space=sflag, size = 0x4, scoped, tag = 'scoped memory for attention.1']
    #allocation10 [shape = 'u8[8192]{0}', space=vmem, size = 0x2000, scoped, tag = 'input window, operand 2, single buffered']
    #allocation11 [shape = 'u8[8192]{0}', space=vmem, size = 0x2000, scoped, tag = 'output window, operand 0, single buffered']
    %8 = vsyncpa [#allocation6], 0
    %9 = vsyncpa [#allocation9], 0
    %10 = vsyncpa [#allocation7], 0
    // Predicated region
    $region2: #{attention.1} parent=1 // pred_check
      _
    $region3: #{attention.1} parent=1 // pred_check_branch
      %12 = sbr.rel (0) target = $region5
    $region4: #{attention.1} parent=1 // pred_region
      %s14 = ssub.s32 256, 256
      %15 = vsyncadd [#allocation6], %s14
      %s16 = sshll.u32 [#allocation5], 4
      %s17 = int_to_ptr.vmem [resolvable:$true] %s16
      %22 = dma.hbm_to_vmem [thread:$0]  %s0, 256, %s17, [#allocation6], 128, 128, 8
    $region5: #{attention.1} parent=1 // pred_fallthru
      _
    // Predicated region
    $region6: #{attention.1} parent=1 // pred_check
      _
    $region7: #{attention.1} parent=1 // pred_check_branch
      %24 = sbr.rel (0) target = $region9
    $region8: #{attention.1} parent=1 // pred_region
      %s26 = ssub.s32 256, 256
      %27 = vsyncadd [#allocation9], %s26
      %s28 = sshll.u32 [#allocation8], 4
      %s29 = int_to_ptr.vmem [resolvable:$true] %s28
      %34 = dma.hbm_to_vmem [thread:$0]  %s1, 256, %s29, [#allocation9], 128, 128, 8
    $region9: #{attention.1} parent=1 // pred_fallthru
      _
    // Predicated region
    $region10: #{attention.1} parent=1 // pred_check
      _
    $region11: #{attention.1} parent=1 // pred_check_branch
      %36 = sbr.rel (0) target = $region13
    $region12: #{attention.1} parent=1 // pred_region
      %s38 = ssub.s32 256, 256
      %39 = vsyncadd [#allocation9], %s38
      %s40 = sshll.u32 [#allocation10], 4
      %s41 = int_to_ptr.vmem [resolvable:$true] %s40
      %46 = dma.hbm_to_vmem [thread:$0]  %s2, 256, %s41, [#allocation9], 128, 128, 8
    $region13: #{attention.1} parent=1 // pred_fallthru
      _
    // Predicated region
    $region14: #{attention.1} parent=1 // pred_check
      _
    $region15: #{attention.1} parent=1 // pred_check_branch
      %48 = sbr.rel (0) target = $region17
    $region16: #{attention.1} parent=1 // pred_region
      %49 = dma.done [#allocation6], 256
    $region17: #{attention.1} parent=1 // pred_fallthru
      _
    // Predicated region
    $region18: #{attention.1} parent=1 // pred_check
      _
    $region19: #{attention.1} parent=1 // pred_check_branch
      %51 = sbr.rel (0) target = $region21
    $region20: #{attention.1} parent=1 // pred_region
      %52 = dma.done [#allocation9], 256
    $region21: #{attention.1} parent=1 // pred_fallthru
      _
    // Predicated region
    $region22: #{attention.1} parent=1 // pred_check
      _
    $region23: #{attention.1} parent=1 // pred_check_branch
      %54 = sbr.rel (0) target = $region25
    $region24: #{attention.1} parent=1 // pred_region
      %55 = dma.done [#allocation9], 256
    $region25: #{attention.1} parent=1 // pred_fallthru
      _
    %p56 = scmp.eq.s32.totalorder 0, 0
    // Predicated region
    $region26: #{attention.1} parent=1 // pred_check
      %p57 = pneg %p56
    $region27: #{attention.1} parent=1 // pred_check_branch
      %59 = sbr.rel (%p57) target = $region29
    $region28: #{attention.1} parent=1 // pred_region
      %vm60 = vcmask 7168
      %61 = vst.msk [vmem:[#allocation2] sm:$0xff] %vm60, -inf
      %62 = vst.msk [vmem:[#allocation2 + $0x8] sm:$0xff] %vm60, -inf
      %63 = vst.msk [vmem:[#allocation3] sm:$0xff] %vm60, 0.0
      %64 = vst.msk [vmem:[#allocation3 + $0x8] sm:$0xff] %vm60, 0.0
      %vm65 = vcmask 261120
      %66 = vst.msk [vmem:[#allocation4] sm:$0xff] %vm65, 0.0
      %67 = vst.msk [vmem:[#allocation4 + $0x8] sm:$0xff] %vm65, 0.0
    $region29: #{attention.1} parent=1 // pred_fallthru
      _
    %v68 = vld [vmem:[#allocation5] sm:$0xff]
    %v69 = vld [vmem:[#allocation5 + $0x8] sm:$0xff]
    %v70 = vmul.f32 %v68, 0.17677669
    %v71 = vmul.f32 %v69, 0.17677669
    %v72 = vld [vmem:[#allocation8] sm:$0xff]
    %v73 = vld [vmem:[#allocation8 + $0x8] sm:$0xff]
    %vm74 = vcmask 261120
    %v76 = vsel %vm74, %v70, 0
    %v79 = vsel %vm74, %v72, 0
    %81 = vmatprep.subr.mxu0 0.0
    %82 = vmatpush1.xpose.msra.mxu0 %v79
    %83 = vmatprep.subr.mxu0 0.0
    %84 = vmatpush1.xpose.msra.mxu0 0.0
    %85 = vmatprep.subr.mxu0 0.0
    %86 = vmatpush1.xpose.msra.mxu0 0.0
    %87 = vmatprep.subr.mxu0 0.0
    %88 = vmatpush1.xpose.msra.mxu0 0.0
    %89 = vmatprep.subr.mxu0 0.0
    %90 = vmatpush1.xpose.msra.mxu0 0.0
    %91 = vmatprep.subr.mxu0 0.0
    %92 = vmatpush1.xpose.msra.mxu0 0.0
    %93 = vmatprep.subr.mxu0 0.0
    %94 = vmatpush1.xpose.msra.mxu0 0.0
    %95 = vmatprep.subr.mxu0 0.0
    %96 = vmatpush1.xpose.msra.mxu0 0.0
    %97 = vmatprep.subr.mxu0 0.0
    %98 = vmatpush1.xpose.msra.mxu0 0.0
    %99 = vmatprep.subr.mxu0 0.0
    %100 = vmatpush1.xpose.msra.mxu0 0.0
    %101 = vmatprep.subr.mxu0 0.0
    %102 = vmatpush1.xpose.msra.mxu0 0.0
    %103 = vmatprep.subr.mxu0 0.0
    %104 = vmatpush1.xpose.msra.mxu0 0.0
    %105 = vmatprep.subr.mxu0 0.0
    %106 = vmatpush1.xpose.msra.mxu0 0.0
    %107 = vmatprep.subr.mxu0 0.0
    %108 = vmatpush1.xpose.msra.mxu0 0.0
    %109 = vmatprep.subr.mxu0 0.0
    %110 = vmatpush1.xpose.msra.mxu0 0.0
    %111 = vmatprep.subr.mxu0 0.0
    %112 = vmatpush1.xpose.msra.mxu0 0.0
    %113 = vmatprep.subr.mxu0 0.0
    %114 = vmatpush1.xpose.msra.mxu0 0.0
    %115 = vmatprep.subr.mxu0 0.0
    %116 = vmatpush1.xpose.msra.mxu0 0.0
    %117 = vmatprep.subr.mxu0 0.0
    %118 = vmatpush1.xpose.msra.mxu0 0.0
    %119 = vmatprep.subr.mxu0 0.0
    %120 = vmatpush1.xpose.msra.mxu0 0.0
    %121 = vmatprep.subr.mxu0 0.0
    %122 = vmatpush1.xpose.msra.mxu0 0.0
    %123 = vmatprep.subr.mxu0 0.0
    %124 = vmatpush1.xpose.msra.mxu0 0.0
    %125 = vmatprep.subr.mxu0 0.0
    %126 = vmatpush1.xpose.msra.mxu0 0.0
    %127 = vmatprep.subr.mxu0 0.0
    %128 = vmatpush1.xpose.msra.mxu0 0.0
    %129 = vmatprep.subr.mxu0 0.0
    %130 = vmatpush1.xpose.msra.mxu0 0.0
    %131 = vmatprep.subr.mxu0 0.0
    %132 = vmatpush1.xpose.msra.mxu0 0.0
    %133 = vmatprep.subr.mxu0 0.0
    %134 = vmatpush1.xpose.msra.mxu0 0.0
    %135 = vmatprep.subr.mxu0 0.0
    %136 = vmatpush1.xpose.msra.mxu0 0.0
    %137 = vmatprep.subr.mxu0 0.0
    %138 = vmatpush1.xpose.msra.mxu0 0.0
    %139 = vmatprep.subr.mxu0 0.0
    %140 = vmatpush1.xpose.msra.mxu0 0.0
    %141 = vmatprep.subr.mxu0 0.0
    %142 = vmatpush1.xpose.msra.mxu0 0.0
    %143 = vmatprep.subr.mxu0 0.0
    %144 = vmatpush1.xpose.msra.mxu0 0.0
    %145 = vmatprep.mubr.f32.mxu0 0.0
    %146 = vmatmul.mubr.f32.gmra.mrb[0].mxu0 %v76
    %v147 = vpop.f32.mrb[0].mxu0
    %v148 = vadd.f32 0.0, %v147
    %v149 = vpop.f32.mrb[0].mxu0
    %150 = vdwg.mxu0
    %v152 = vsel %vm74, %v71, 0
    %v155 = vsel %vm74, %v73, 0
    %157 = vmatprep.subr.mxu0 0.0
    %158 = vmatpush1.xpose.msra.mxu0 %v155
    %159 = vmatprep.subr.mxu0 0.0
    %160 = vmatpush1.xpose.msra.mxu0 0.0
    %161 = vmatprep.subr.mxu0 0.0
    %162 = vmatpush1.xpose.msra.mxu0 0.0
    %163 = vmatprep.subr.mxu0 0.0
    %164 = vmatpush1.xpose.msra.mxu0 0.0
    %165 = vmatprep.subr.mxu0 0.0
    %166 = vmatpush1.xpose.msra.mxu0 0.0
    %167 = vmatprep.subr.mxu0 0.0
    %168 = vmatpush1.xpose.msra.mxu0 0.0
    %169 = vmatprep.subr.mxu0 0.0
    %170 = vmatpush1.xpose.msra.mxu0 0.0
    %171 = vmatprep.subr.mxu0 0.0
    %172 = vmatpush1.xpose.msra.mxu0 0.0
    %173 = vmatprep.subr.mxu0 0.0
    %174 = vmatpush1.xpose.msra.mxu0 0.0
    %175 = vmatprep.subr.mxu0 0.0
    %176 = vmatpush1.xpose.msra.mxu0 0.0
    %177 = vmatprep.subr.mxu0 0.0
    %178 = vmatpush1.xpose.msra.mxu0 0.0
    %179 = vmatprep.subr.mxu0 0.0
    %180 = vmatpush1.xpose.msra.mxu0 0.0
    %181 = vmatprep.subr.mxu0 0.0
    %182 = vmatpush1.xpose.msra.mxu0 0.0
    %183 = vmatprep.subr.mxu0 0.0
    %184 = vmatpush1.xpose.msra.mxu0 0.0
    %185 = vmatprep.subr.mxu0 0.0
    %186 = vmatpush1.xpose.msra.mxu0 0.0
    %187 = vmatprep.subr.mxu0 0.0
    %188 = vmatpush1.xpose.msra.mxu0 0.0
    %189 = vmatprep.subr.mxu0 0.0
    %190 = vmatpush1.xpose.msra.mxu0 0.0
    %191 = vmatprep.subr.mxu0 0.0
    %192 = vmatpush1.xpose.msra.mxu0 0.0
    %193 = vmatprep.subr.mxu0 0.0
    %194 = vmatpush1.xpose.msra.mxu0 0.0
    %195 = vmatprep.subr.mxu0 0.0
    %196 = vmatpush1.xpose.msra.mxu0 0.0
    %197 = vmatprep.subr.mxu0 0.0
    %198 = vmatpush1.xpose.msra.mxu0 0.0
    %199 = vmatprep.subr.mxu0 0.0
    %200 = vmatpush1.xpose.msra.mxu0 0.0
    %201 = vmatprep.subr.mxu0 0.0
    %202 = vmatpush1.xpose.msra.mxu0 0.0
    %203 = vmatprep.subr.mxu0 0.0
    %204 = vmatpush1.xpose.msra.mxu0 0.0
    %205 = vmatprep.subr.mxu0 0.0
    %206 = vmatpush1.xpose.msra.mxu0 0.0
    %207 = vmatprep.subr.mxu0 0.0
    %208 = vmatpush1.xpose.msra.mxu0 0.0
    %209 = vmatprep.subr.mxu0 0.0
    %210 = vmatpush1.xpose.msra.mxu0 0.0
    %211 = vmatprep.subr.mxu0 0.0
    %212 = vmatpush1.xpose.msra.mxu0 0.0
    %213 = vmatprep.subr.mxu0 0.0
    %214 = vmatpush1.xpose.msra.mxu0 0.0
    %215 = vmatprep.subr.mxu0 0.0
    %216 = vmatpush1.xpose.msra.mxu0 0.0
    %217 = vmatprep.subr.mxu0 0.0
    %218 = vmatpush1.xpose.msra.mxu0 0.0
    %219 = vmatprep.subr.mxu0 0.0
    %220 = vmatpush1.xpose.msra.mxu0 0.0
    %221 = vmatprep.mubr.f32.mxu0 0.0
    %222 = vmatmul.mubr.f32.gmra.mrb[0].mxu0 %v152
    %v223 = vpop.f32.mrb[0].mxu0
    %v224 = vadd.f32 0.0, %v223
    %v225 = vpop.f32.mrb[0].mxu0
    %226 = vdwg.mxu0
    %v227 = vld [vmem:[#allocation2] sm:$0xff]
    %v228 = vld [vmem:[#allocation2 + $0x8] sm:$0xff]
    %vm229 = vcmask 64512
    %v230 = vsel %vm229, %v148, -inf
    %231 = vmax.xlane.f32.xlu0 %v230
    %v232 = vpop.xlane.xlu0 %231
    %v233 = vsel %vm229, %v224, -inf
    %234 = vmax.xlane.f32.xlu0 %v233
    %v235 = vpop.xlane.xlu0 %234
    %v236 = vmax.f32 %v227, %v232
    %v237 = vmax.f32 %v228, %v235
    %v238 = vsub.f32 %v227, %v236
    %v239 = vsub.f32 %v228, %v237
    %v240 = vmul.f32 %v238, 1.442695
    %v241 = vpow.pop %v240
    %v242 = vmul.f32 %v239, 1.442695
    %v243 = vpow.pop %v242
    %245 = vset.pattern.permute.xlu0 0
    %246 = vperm.xlu0 %245, %v236
    %v247 = vpop.permute.xlu0 %246
    %250 = vset.pattern.permute.xlu0 0
    %251 = vperm.xlu0 %250, %v237
    %v252 = vpop.permute.xlu0 %251
    %v254 = vsub.f32 %v148, %v247
    %v255 = vsub.f32 %v224, %v252
    %v256 = vmul.f32 %v254, 1.442695
    %v257 = vpow.pop %v256
    %v258 = vmul.f32 %v255, 1.442695
    %v259 = vpow.pop %v258
    %v260 = vld [vmem:[#allocation3] sm:$0xff]
    %v261 = vld [vmem:[#allocation3 + $0x8] sm:$0xff]
    %v262 = vmul.f32 %v241, %v260
    %v263 = vmul.f32 %v243, %v261
    %v264 = vsel %vm229, %v257, 0.0
    %265 = vadd.xlane.f32.xlu0 %v264
    %v266 = vpop.xlane.xlu0 %265
    %v267 = vsel %vm229, %v259, 0.0
    %268 = vadd.xlane.f32.xlu0 %v267
    %v269 = vpop.xlane.xlu0 %268
    %v270 = vadd.f32 %v262, %v266
    %v271 = vadd.f32 %v263, %v269
    %vm272 = vcmask 7168
    %273 = vst.msk [vmem:[#allocation3] sm:$0xff] %vm272, %v270
    %274 = vst.msk [vmem:[#allocation3 + $0x8] sm:$0xff] %vm272, %v271
    %v275 = vld [vmem:[#allocation10] sm:$0xff]
    %v276 = vld [vmem:[#allocation10 + $0x8] sm:$0xff]
    %v278 = vsel %vm229, %v257, 0
    %280 = vmatprep.subr.mxu0 0.0
    %281 = vmatpush1.msra.mxu0 %v275
    %282 = vmatprep.subr.mxu0 0.0
    %283 = vmatpush1.msra.mxu0 0.0
    %284 = vmatprep.subr.mxu0 0.0
    %285 = vmatpush1.msra.mxu0 0.0
    %286 = vmatprep.subr.mxu0 0.0
    %287 = vmatpush1.msra.mxu0 0.0
    %288 = vmatprep.subr.mxu0 0.0
    %289 = vmatpush1.msra.mxu0 0.0
    %290 = vmatprep.subr.mxu0 0.0
    %291 = vmatpush1.msra.mxu0 0.0
    %292 = vmatprep.subr.mxu0 0.0
    %293 = vmatpush1.msra.mxu0 0.0
    %294 = vmatprep.subr.mxu0 0.0
    %295 = vmatpush1.msra.mxu0 0.0
    %296 = vmatprep.subr.mxu0 0.0
    %297 = vmatpush1.msra.mxu0 0.0
    %298 = vmatprep.subr.mxu0 0.0
    %299 = vmatpush1.msra.mxu0 0.0
    %300 = vmatprep.subr.mxu0 0.0
    %301 = vmatpush1.msra.mxu0 0.0
    %302 = vmatprep.subr.mxu0 0.0
    %303 = vmatpush1.msra.mxu0 0.0
    %304 = vmatprep.subr.mxu0 0.0
    %305 = vmatpush1.msra.mxu0 0.0
    %306 = vmatprep.subr.mxu0 0.0
    %307 = vmatpush1.msra.mxu0 0.0
    %308 = vmatprep.subr.mxu0 0.0
    %309 = vmatpush1.msra.mxu0 0.0
    %310 = vmatprep.subr.mxu0 0.0
    %311 = vmatpush1.msra.mxu0 0.0
    %312 = vmatprep.subr.mxu0 0.0
    %313 = vmatpush1.msra.mxu0 0.0
    %314 = vmatprep.subr.mxu0 0.0
    %315 = vmatpush1.msra.mxu0 0.0
    %316 = vmatprep.subr.mxu0 0.0
    %317 = vmatpush1.msra.mxu0 0.0
    %318 = vmatprep.subr.mxu0 0.0
    %319 = vmatpush1.msra.mxu0 0.0
    %320 = vmatprep.subr.mxu0 0.0
    %321 = vmatpush1.msra.mxu0 0.0
    %322 = vmatprep.subr.mxu0 0.0
    %323 = vmatpush1.msra.mxu0 0.0
    %324 = vmatprep.subr.mxu0 0.0
    %325 = vmatpush1.msra.mxu0 0.0
    %326 = vmatprep.subr.mxu0 0.0
    %327 = vmatpush1.msra.mxu0 0.0
    %328 = vmatprep.subr.mxu0 0.0
    %329 = vmatpush1.msra.mxu0 0.0
    %330 = vmatprep.subr.mxu0 0.0
    %331 = vmatpush1.msra.mxu0 0.0
    %332 = vmatprep.subr.mxu0 0.0
    %333 = vmatpush1.msra.mxu0 0.0
    %334 = vmatprep.subr.mxu0 0.0
    %335 = vmatpush1.msra.mxu0 0.0
    %336 = vmatprep.subr.mxu0 0.0
    %337 = vmatpush1.msra.mxu0 0.0
    %338 = vmatprep.subr.mxu0 0.0
    %339 = vmatpush1.msra.mxu0 0.0
    %340 = vmatprep.subr.mxu0 0.0
    %341 = vmatpush1.msra.mxu0 0.0
    %342 = vmatprep.subr.mxu0 0.0
    %343 = vmatpush1.msra.mxu0 0.0
    %344 = vmatprep.mubr.f32.mxu0 0.0
    %345 = vmatmul.mubr.f32.gmra.mrb[0].mxu0 %v278
    %v346 = vpop.f32.mrb[0].mxu0
    %v347 = vadd.f32 0.0, %v346
    %v348 = vpop.f32.mrb[0].mxu0
    %349 = vdwg.mxu0
    %v351 = vsel %vm229, %v259, 0
    %353 = vmatprep.subr.mxu0 0.0
    %354 = vmatpush1.msra.mxu0 %v276
    %355 = vmatprep.subr.mxu0 0.0
    %356 = vmatpush1.msra.mxu0 0.0
    %357 = vmatprep.subr.mxu0 0.0
    %358 = vmatpush1.msra.mxu0 0.0
    %359 = vmatprep.subr.mxu0 0.0
    %360 = vmatpush1.msra.mxu0 0.0
    %361 = vmatprep.subr.mxu0 0.0
    %362 = vmatpush1.msra.mxu0 0.0
    %363 = vmatprep.subr.mxu0 0.0
    %364 = vmatpush1.msra.mxu0 0.0
    %365 = vmatprep.subr.mxu0 0.0
    %366 = vmatpush1.msra.mxu0 0.0
    %367 = vmatprep.subr.mxu0 0.0
    %368 = vmatpush1.msra.mxu0 0.0
    %369 = vmatprep.subr.mxu0 0.0
    %370 = vmatpush1.msra.mxu0 0.0
    %371 = vmatprep.subr.mxu0 0.0
    %372 = vmatpush1.msra.mxu0 0.0
    %373 = vmatprep.subr.mxu0 0.0
    %374 = vmatpush1.msra.mxu0 0.0
    %375 = vmatprep.subr.mxu0 0.0
    %376 = vmatpush1.msra.mxu0 0.0
    %377 = vmatprep.subr.mxu0 0.0
    %378 = vmatpush1.msra.mxu0 0.0
    %379 = vmatprep.subr.mxu0 0.0
    %380 = vmatpush1.msra.mxu0 0.0
    %381 = vmatprep.subr.mxu0 0.0
    %382 = vmatpush1.msra.mxu0 0.0
    %383 = vmatprep.subr.mxu0 0.0
    %384 = vmatpush1.msra.mxu0 0.0
    %385 = vmatprep.subr.mxu0 0.0
    %386 = vmatpush1.msra.mxu0 0.0
    %387 = vmatprep.subr.mxu0 0.0
    %388 = vmatpush1.msra.mxu0 0.0
    %389 = vmatprep.subr.mxu0 0.0
    %390 = vmatpush1.msra.mxu0 0.0
    %391 = vmatprep.subr.mxu0 0.0
    %392 = vmatpush1.msra.mxu0 0.0
    %393 = vmatprep.subr.mxu0 0.0
    %394 = vmatpush1.msra.mxu0 0.0
    %395 = vmatprep.subr.mxu0 0.0
    %396 = vmatpush1.msra.mxu0 0.0
    %397 = vmatprep.subr.mxu0 0.0
    %398 = vmatpush1.msra.mxu0 0.0
    %399 = vmatprep.subr.mxu0 0.0
    %400 = vmatpush1.msra.mxu0 0.0
    %401 = vmatprep.subr.mxu0 0.0
    %402 = vmatpush1.msra.mxu0 0.0
    %403 = vmatprep.subr.mxu0 0.0
    %404 = vmatpush1.msra.mxu0 0.0
    %405 = vmatprep.subr.mxu0 0.0
    %406 = vmatpush1.msra.mxu0 0.0
    %407 = vmatprep.subr.mxu0 0.0
    %408 = vmatpush1.msra.mxu0 0.0
    %409 = vmatprep.subr.mxu0 0.0
    %410 = vmatpush1.msra.mxu0 0.0
    %411 = vmatprep.subr.mxu0 0.0
    %412 = vmatpush1.msra.mxu0 0.0
    %413 = vmatprep.subr.mxu0 0.0
    %414 = vmatpush1.msra.mxu0 0.0
    %415 = vmatprep.subr.mxu0 0.0
    %416 = vmatpush1.msra.mxu0 0.0
    %417 = vmatprep.mubr.f32.mxu0 0.0
    %418 = vmatmul.mubr.f32.gmra.mrb[0].mxu0 %v351
    %v419 = vpop.f32.mrb[0].mxu0
    %v420 = vadd.f32 0.0, %v419
    %v421 = vpop.f32.mrb[0].mxu0
    %422 = vdwg.mxu0
    %v423 = vld [vmem:[#allocation4] sm:$0xff]
    %v424 = vld [vmem:[#allocation4 + $0x8] sm:$0xff]
    %426 = vset.pattern.permute.xlu0 0
    %427 = vperm.xlu0 %426, %v241
    %v428 = vpop.permute.xlu0 %427
    %431 = vset.pattern.permute.xlu0 0
    %432 = vperm.xlu0 %431, %v243
    %v433 = vpop.permute.xlu0 %432
    %v435 = vmul.f32 %v428, %v423
    %v436 = vmul.f32 %v433, %v424
    %v437 = vadd.f32 %v435, %v347
    %v438 = vadd.f32 %v436, %v420
    %439 = vst.msk [vmem:[#allocation4] sm:$0xff] %vm74, %v437
    %440 = vst.msk [vmem:[#allocation4 + $0x8] sm:$0xff] %vm74, %v438
    %441 = vst.msk [vmem:[#allocation2] sm:$0xff] %vm272, %v236
    %442 = vst.msk [vmem:[#allocation2 + $0x8] sm:$0xff] %vm272, %v237
    // Predicated region
    $region30: #{attention.1} parent=1 // pred_check
      %p443 = pneg %p56
    $region31: #{attention.1} parent=1 // pred_check_branch
      %445 = sbr.rel (%p443) target = $region33
    $region32: #{attention.1} parent=1 // pred_region
      %v446 = vld [vmem:[#allocation3] sm:$0xff]
      %v447 = vld [vmem:[#allocation3 + $0x8] sm:$0xff]
      %v448 = vrcp.pop %v446
      %v449 = vrcp.pop %v447
      %v450 = vld [vmem:[#allocation4] sm:$0xff]
      %v451 = vld [vmem:[#allocation4 + $0x8] sm:$0xff]
      %453 = vset.pattern.permute.xlu0 0
      %454 = vperm.xlu0 %453, %v448
      %v455 = vpop.permute.xlu0 %454
      %458 = vset.pattern.permute.xlu0 0
      %459 = vperm.xlu0 %458, %v449
      %v460 = vpop.permute.xlu0 %459
      %v462 = vmul.f32 %v450, %v455
      %v463 = vmul.f32 %v451, %v460
      %464 = vst.msk [vmem:[#allocation11] sm:$0xff] %vm74, %v462
      %465 = vst.msk [vmem:[#allocation11 + $0x8] sm:$0xff] %vm74, %v463
    $region33: #{attention.1} parent=1 // pred_fallthru
      _
    // Predicated region
    $region34: #{attention.1} parent=1 // pred_check
      _
    $region35: #{attention.1} parent=1 // pred_check_branch
      %467 = sbr.rel (0) target = $region37
    $region36: #{attention.1} parent=1 // pred_region
      %s469 = ssub.s32 256, 256
      %470 = vsyncadd [#allocation7], %s469
      %s471 = sshll.u32 [#allocation11], 4
      %s472 = int_to_ptr.vmem [resolvable:$true] %s471
      %477 = dma.vmem_to_hbm [thread:$0]  %s472, 256, %s3, [#allocation7], 128, 128, 8
    $region37: #{attention.1} parent=1 // pred_fallthru
      _
    // Predicated region
    $region38: #{attention.1} parent=1 // pred_check
      _
    $region39: #{attention.1} parent=1 // pred_check_branch
      %479 = sbr.rel (0) target = $region41
    $region40: #{attention.1} parent=1 // pred_region
      %480 = dma.done [#allocation7], 256
    $region41: #{attention.1} parent=1 // pred_fallthru
      _
    %481 = vsyncpa [#allocation6], 1
    %482 = vsyncpa [#allocation9], 1
    %483 = vsyncpa [#allocation7], 1

</llo_original>
